<compile_context>
chip_gen: v7x
topology: tpu7x:2x2x1
jax: 0.10.0
libtpu: 0.0.40
codegen_flags: <defaults>
</compile_context>

<pallas_src>
import math

import jax
import jax.numpy as jnp
from jax.experimental import pallas as pl
from jax.experimental.pallas import tpu as pltpu


_TARGET_TILE_BYTES = 8 * 1024 * 1024    # per x tile; ~4x with double-buffered in+out
_VMEM_LIMIT_BYTES = 48 * 1024 * 1024    # < 64 MiB physical on v7x, < 128 MiB on v5e/v6e


def _round_up(x, m):
    return ((x + m - 1) // m) * m


def _dyt_kernel(alpha_ref, gamma_ref, beta_ref, x_ref, o_ref):
    # alpha_ref: SMEM (1,) scalar.
    # gamma_ref/beta_ref: VMEM, either (1, tl) (per-feature, broadcast over rows)
    #                     or (tm, 1) (per-row channel params, broadcast over lanes).
    # x_ref/o_ref: VMEM (tm, tl) tile.
    alpha = alpha_ref[0]
    t = jnp.tanh(alpha * x_ref[...])                      # EUP
    o_ref[...] = (gamma_ref[...] * t + beta_ref[...]).astype(o_ref.dtype)  # VPU


def _choose_tiles(n, d, itemsize):
    """Pick (tm, tl) row/lane tile sizes for an (n, d) slab."""
    # Lane tile: keep the full feature width when it fits the byte budget with
    # at least 8 rows, else split into a multiple of 128 (unmasked full-lane vst).
    max_tl = max(128, _TARGET_TILE_BYTES // (8 * itemsize))
    tl = d if d <= max_tl else (max_tl // 128) * 128
    # Row tile: fill the byte budget, multiple of 8, capped.
    tm = _TARGET_TILE_BYTES // max(1, tl * itemsize)
    tm = max(8, min(tm, 2048))
    tm -= tm % 8
    n_pad = _round_up(n, 8)
    if n_pad >= 16:
        # Leave at least 2 row steps so both v7x TensorCores get work
        # (harmless on 1-TC v5e/v6e).
        tm = min(tm, max(8, _round_up(-(-n // 2), 8)))
    tm = min(tm, n_pad)
    tm = max(8, tm - (tm % 8))
    return tm, tl


def _dyt_2d(x2d, alpha, gamma2d, beta2d):
    """Run the kernel on a 2-D slab.

    gamma2d/beta2d are either (1, d) (per-feature) or (n, 1) (per-row).
    """
    n, d = x2d.shape
    itemsize = jnp.dtype(x2d.dtype).itemsize
    tm, tl = _choose_tiles(n, d, itemsize)
    grid = (pl.cdiv(n, tm), pl.cdiv(d, tl))

    if gamma2d.shape[0] == 1:
        # Per-feature params: one (1, tl) strip per lane-tile, broadcast down rows.
        param_spec = pl.BlockSpec((1, tl), lambda i, j: (0, j))
    else:
        # Per-row params (NCHW channel path): (tm, 1) column, broadcast across lanes.
        param_spec = pl.BlockSpec((tm, 1), lambda i, j: (i, 0))

    return pl.pallas_call(
        _dyt_kernel,
        out_shape=jax.ShapeDtypeStruct((n, d), x2d.dtype),
        grid_spec=pltpu.PrefetchScalarGridSpec(
            num_scalar_prefetch=0,
            grid=grid,
            in_specs=[
                pl.BlockSpec(memory_space=pltpu.SMEM),          # alpha (1,)
                param_spec,                                      # gamma
                param_spec,                                      # beta
                pl.BlockSpec((tm, tl), lambda i, j: (i, j)),     # x tile
            ],
            out_specs=pl.BlockSpec((tm, tl), lambda i, j: (i, j)),
        ),
        compiler_params=pltpu.CompilerParams(
            dimension_semantics=("parallel", "parallel"),
            vmem_limit_bytes=_VMEM_LIMIT_BYTES,
        ),
    )(alpha, gamma2d, beta2d, x2d)


def _fold_factor(n, d):
    """Fold k consecutive rows into the lane dim so the last dim becomes a
    multiple of 128. Per-feature broadcast is preserved because gamma/beta are
    tiled k times (they repeat every d lanes)."""
    if d >= 128:
        return 1
    k = 128 // math.gcd(d, 128)
    return k if (k > 1 and n % k == 0) else 1


def dyt(x, alpha, gamma, beta):
    """DyT forward. x: (..., D) with feature dim last, or 4-D NCHW (B, C, H, W)."""
    alpha = jnp.asarray(alpha, jnp.float32).reshape((1,))

    if x.ndim == 4:
        b, c, h, w = x.shape
        # NCHW handled WITHOUT transposes: rows = B*C, lanes = H*W.
        # gamma/beta become per-row vectors (tiny), broadcast over spatial lanes,
        # matching gamma.view(1, -1, 1, 1).
        x2d = x.reshape(b * c, h * w)
        g2d = jnp.tile(gamma.reshape(-1), b).reshape(b * c, 1)
        b2d = jnp.tile(beta.reshape(-1), b).reshape(b * c, 1)
        y2d = _dyt_2d(x2d, alpha, g2d, b2d)
        return y2d.reshape(b, c, h, w)

    # Generic feature-last path (1-D, 2-D, 3-D, ...).
    orig_shape = x.shape
    d = x.shape[-1]
    n = x.size // d
    x2d = x.reshape(n, d)
    k = _fold_factor(n, d)
    if k > 1:
        x2d = x2d.reshape(n // k, k * d)
        g2d = jnp.tile(gamma.reshape(-1), k).reshape(1, k * d)
        b2d = jnp.tile(beta.reshape(-1), k).reshape(1, k * d)
    else:
        g2d = gamma.reshape(1, d)
        b2d = beta.reshape(1, d)
    y2d = _dyt_2d(x2d, alpha, g2d, b2d)
    return y2d.reshape(orig_shape)


if __name__ == "__main__":
    key = jax.random.PRNGKey(0)
    k3, k4 = jax.random.split(key)

    init_alpha = 0.5
    alpha = jnp.ones((1,), jnp.float32) * init_alpha

    # --- 3-D transformer-style input: (batch, seq, hidden) ---
    batch, seq, hidden = 2, 8, 32
    x3 = jax.random.normal(k3, (batch, seq, hidden), dtype=jnp.float32)
    gamma3 = jnp.full((hidden,), 1.25, jnp.float32)
    beta3 = jnp.full((hidden,), 0.1, jnp.float32)

    y3 = jax.block_until_ready(jax.jit(dyt)(x3, alpha, gamma3, beta3))
    ref3 = gamma3.reshape(1, 1, -1) * jnp.tanh(alpha * x3) + beta3.reshape(1, 1, -1)
    assert y3.shape == x3.shape
    assert jnp.allclose(y3, ref3, atol=1e-5, rtol=1e-5)

    # --- 4-D NCHW input: (batch, channels, H, W) ---
    b, c, h, w = 2, 4, 16, 16
    x4 = jax.random.normal(k4, (b, c, h, w), dtype=jnp.float32)
    gamma4 = jnp.linspace(0.5, 1.5, c, dtype=jnp.float32)
    beta4 = jnp.linspace(-0.2, 0.2, c, dtype=jnp.float32)

    y4 = jax.block_until_ready(jax.jit(dyt)(x4, alpha, gamma4, beta4))
    ref4 = (gamma4.reshape(1, -1, 1, 1) * jnp.tanh(alpha * x4)
            + beta4.reshape(1, -1, 1, 1))
    assert y4.shape == x4.shape
    assert jnp.allclose(y4, ref4, atol=1e-5, rtol=1e-5)

    # --- 2-D / generic path: (n, hidden) ---
    x2 = jax.random.normal(key, (8, hidden), dtype=jnp.float32)
    y2 = jax.block_until_ready(jax.jit(dyt)(x2, alpha, gamma3, beta3))
    ref2 = gamma3 * jnp.tanh(alpha * x2) + beta3
    assert jnp.allclose(y2, ref2, atol=1e-5, rtol=1e-5)

    print("KERNEL_OK")
</pallas_src>

<mosaic_0001>
module attributes {stable_mosaic.version = 11 : i64} {
  func.func @_dyt_kernel(%arg0: i32, %arg1: i32, %arg2: memref<1xf32, #tpu.memory_space<smem>>, %arg3: memref<1x128xf32, #tpu.memory_space<vmem>>, %arg4: memref<1x128xf32, #tpu.memory_space<vmem>>, %arg5: memref<8x128xf32, #tpu.memory_space<vmem>>, %arg6: memref<8x128xf32, #tpu.memory_space<vmem>>) attributes {dimension_semantics = [#tpu.dimension_semantics<parallel>, #tpu.dimension_semantics<parallel>], iteration_bounds = array<i64: 1, 1>, scalar_prefetch = 0 : i64, scratch_operands = 0 : i64, tpu.core_type = #tpu.core_type<tc>, window_params = [{transform_indices = @transform_0, window_bounds = array<i64: 1>}, {transform_indices = @transform_1, window_bounds = array<i64: 1, 128>}, {transform_indices = @transform_2, window_bounds = array<i64: 1, 128>}, {transform_indices = @transform_3, window_bounds = array<i64: 8, 128>}, {transform_indices = @transform_4, window_bounds = array<i64: 8, 128>}]} {
    %c0 = arith.constant 0 : index
    %0 = memref.load %arg2[%c0] : memref<1xf32, #tpu.memory_space<smem>>
    %c0_0 = arith.constant 0 : index
    %c0_1 = arith.constant 0 : index
    %1 = vector.load %arg5[%c0_0, %c0_1] : memref<8x128xf32, #tpu.memory_space<vmem>>, vector<8x128xf32>
    %2 = vector.broadcast %0 : f32 to vector<8x128xf32>
    %3 = arith.mulf %2, %1 : vector<8x128xf32>
    %4 = math.tanh %3 : vector<8x128xf32>
    %c0_2 = arith.constant 0 : index
    %c0_3 = arith.constant 0 : index
    %5 = vector.load %arg3[%c0_2, %c0_3] : memref<1x128xf32, #tpu.memory_space<vmem>>, vector<1x128xf32>
    %6 = vector.broadcast %5 : vector<1x128xf32> to vector<8x128xf32>
    %7 = arith.mulf %6, %4 : vector<8x128xf32>
    %c0_4 = arith.constant 0 : index
    %c0_5 = arith.constant 0 : index
    %8 = vector.load %arg4[%c0_4, %c0_5] : memref<1x128xf32, #tpu.memory_space<vmem>>, vector<1x128xf32>
    %9 = vector.broadcast %8 : vector<1x128xf32> to vector<8x128xf32>
    %10 = arith.addf %7, %9 : vector<8x128xf32>
    %c0_6 = arith.constant 0 : index
    %c0_7 = arith.constant 0 : index
    %11 = vector.load %arg6[%c0_6, %c0_7] : memref<8x128xf32, #tpu.memory_space<vmem>>, vector<8x128xf32>
    tpu.vector_store %arg6[%c0_6, %c0_7], %10 {strides = array<i32>} : memref<8x128xf32, #tpu.memory_space<vmem>>, vector<8x128xf32>,
    return
  }
  func.func @transform_0(%arg0: i32, %arg1: i32) -> i32 {
    %c0_i32 = arith.constant 0 : i32
    %c0_i32_0 = arith.constant 0 : i32
    return %c0_i32 : i32
  }
  func.func @transform_1(%arg0: i32, %arg1: i32) -> (i32, i32) {
    %c0_i32 = arith.constant 0 : i32
    %c0_i32_0 = arith.constant 0 : i32
    return %c0_i32, %arg1 : i32, i32
  }
  func.func @transform_2(%arg0: i32, %arg1: i32) -> (i32, i32) {
    %c0_i32 = arith.constant 0 : i32
    %c0_i32_0 = arith.constant 0 : i32
    return %c0_i32, %arg1 : i32, i32
  }
  func.func @transform_3(%arg0: i32, %arg1: i32) -> (i32, i32) {
    %c0_i32 = arith.constant 0 : i32
    return %arg0, %arg1 : i32, i32
  }
  func.func @transform_4(%arg0: i32, %arg1: i32) -> (i32, i32) {
    %c0_i32 = arith.constant 0 : i32
    return %arg0, %arg1 : i32, i32
  }
}

</mosaic_0001>

<llo_original>
// kernel: tile.14
$region0: #{tile.14}
  %s0 = inlined_call_operand.vmem [shape: f32[4,32], index: 0, kind: input, shape index: {}]
  %s1 = inlined_call_operand.vmem [shape: f32[1,128], index: 1, kind: output, shape index: {}]
  $region1: #{tile.14} parent=0
    #allocation0 [shape = 'u8[4096]{0}', space=vmem, size = 0x1000, scoped, tag = 'scoped mem for output reshape']
    #allocation1 [shape = 'u8[4096]{0}', space=vmem, size = 0x1000, scoped, tag = 'scoped mem for input reshape']
    %s3 = sshllo.u32 0, 4
    %v4 = vld [vmem:[%s0] sm:%s3]
    %5 = vst [vmem:[#allocation1] sm:%s3] %v4
    %v6 = vld [vmem:[#allocation1] sm:$0x1]
    %vm7 = vcmask 261120
    %8 = vst.msk [vmem:[#allocation0] sm:$0x1] %vm7, %v6
    %s9 = scalar_lea.vmem [#allocation1], 3
    %v10 = vld [vmem:[%s9] sm:$0x1]
    %11 = vrot.lane.b32.xlu0 %v10, 96
    %v12 = vpop.permute.xlu0 %11
    %vm13 = vcmask 1048320
    %14 = vst.msk [vmem:[#allocation0] sm:$0x1] %vm13, %v12
    %s15 = scalar_lea.vmem [#allocation1], 2
    %v16 = vld [vmem:[%s15] sm:$0x1]
    %17 = vrot.lane.b32.xlu0 %v16, 64
    %v18 = vpop.permute.xlu0 %17
    %vm19 = vcmask 785920
    %20 = vst.msk [vmem:[#allocation0] sm:$0x1] %vm19, %v18
    %s21 = scalar_lea.vmem [#allocation1], 1
    %v22 = vld [vmem:[%s21] sm:$0x1]
    %23 = vrot.lane.b32.xlu0 %v22, 32
    %v24 = vpop.permute.xlu0 %23
    %vm25 = vcmask 523520
    %26 = vst.msk [vmem:[#allocation0] sm:$0x1] %vm25, %v24
    %s28 = sshllo.u32 0, 1
    %v30 = vld [vmem:[#allocation0] sm:%s28]
    %s31 = sshllo.u32 0, 1
    %32 = vst [vmem:[%s1] sm:%s31] %v30

// kernel: tile.13
$region0: #{tile.13}
  #allocation0 [shape = 's32[1]{0}', space=sflag, size = 0x4, scoped, tag = 'scoped memory for tile.13']
  %s0 = inlined_call_operand.vmem [shape: f32[32], index: 0, kind: input, shape index: {}]
  %s1 = inlined_call_operand.vmem [shape: f32[4,32], index: 1, kind: output, shape index: {}]
  // Predicated region
  $region2: #{tile.13} parent=0 // pred_check
    _
  $region3: #{tile.13} parent=0 // pred_check_branch
    %3 = sbr.rel (0) target = $region5
  $region4: #{tile.13} parent=0 // pred_region
    _
  $region5: #{tile.13} parent=0 // pred_fallthru
    _
  %v4 = vld [vmem:[%s0] ss:$0 sm:$0xff]
  %5 = vst [vmem:[%s1] sm:$0xf] %v4

// kernel: dyt.1
$region0: #{dyt.1}
  #allocation0 [shape = 'u32[]', space=smem, size = 0x4, offset = 0x4, fixed_abs, tag = 'smem constant byte address 0x4 - core index']
  #allocation1 [shape = 'u32[144,128]{1,0:T(1,128)}', space=vmem, size = 0x12000, scoped, tag = 'internal scratch']
  #allocation2 [shape = 'f32[1]{0:T(128)S(6)}', space=smem, size = 0x200, scoped, tag = 'scoped memory for dyt.1']
  %s0 = inlined_call_operand.<no memory space> [shape: f32[1], index: 0, kind: input, shape index: {}]
  %s1 = inlined_call_operand.vmem [shape: f32[1,128], index: 1, kind: input, shape index: {}]
  %s2 = inlined_call_operand.vmem [shape: f32[1,128], index: 2, kind: input, shape index: {}]
  %s3 = inlined_call_operand.vmem [shape: f32[4,128], index: 3, kind: input, shape index: {}]
  %s4 = inlined_call_operand.vmem [shape: f32[4,128], index: 4, kind: output, shape index: {}]
  %s5 = sld [smem:[#allocation0]]
  $region56: #{dyt.1} parent=0
    _
  %s7 = ssub.s32 1, %s5
  %s8 = scalar_select 0, %s7, %s5
  %9 = sst [smem:[#allocation2]] %s0
  $region1: #{dyt.1} parent=0
    #allocation3 [shape = 'u8[4096]{0}', space=vmem, size = 0x1000, scoped, tag = 'output window, operand 0, single buffered']
    // Predicated region
    $region2: #{dyt.1} parent=1 // pred_check
      _
    $region3: #{dyt.1} parent=1 // pred_check_branch
      %11 = sbr.rel (0) target = $region5
    $region4: #{dyt.1} parent=1 // pred_region
      _
    $region5: #{dyt.1} parent=1 // pred_fallthru
      _
    // Predicated region
    $region6: #{dyt.1} parent=1 // pred_check
      _
    $region7: #{dyt.1} parent=1 // pred_check_branch
      %13 = sbr.rel (0) target = $region9
    $region8: #{dyt.1} parent=1 // pred_region
      _
    $region9: #{dyt.1} parent=1 // pred_fallthru
      _
    // Predicated region
    $region10: #{dyt.1} parent=1 // pred_check
      _
    $region11: #{dyt.1} parent=1 // pred_check_branch
      %15 = sbr.rel (0) target = $region13
    $region12: #{dyt.1} parent=1 // pred_region
      _
    $region13: #{dyt.1} parent=1 // pred_fallthru
      _
    // Predicated region
    $region14: #{dyt.1} parent=1 // pred_check
      _
    $region15: #{dyt.1} parent=1 // pred_check_branch
      %17 = sbr.rel (0) target = $region17
    $region16: #{dyt.1} parent=1 // pred_region
      _
    $region17: #{dyt.1} parent=1 // pred_fallthru
      _
    %s18 = sld [smem:[#allocation2]]
    %v19 = vld [vmem:[%s3] sm:$0xff]
    %v20 = vstv %s18
    %v21 = vmul.f32 %v20, %v19
    %v22 = vtanh.pop %v21
    %v23 = vld [vmem:[%s1] sm:$0x1]
    %v25 = vlaneseq
    %v26 = vshrl.u32 %v25, 7
    %v27 = vsub.s32 0, %v26
    %v28 = vrot.slane %v23, %v27
    %v30 = vmul.f32 %v28, %v22
    %v31 = vld [vmem:[%s2] sm:$0x1]
    %v33 = vlaneseq
    %v34 = vshrl.u32 %v33, 7
    %v35 = vsub.s32 0, %v34
    %v36 = vrot.slane %v31, %v35
    %v38 = vadd.f32 %v30, %v36
    %39 = vst [vmem:[#allocation3] sm:$0xff] %v38
    // Predicated region
    $region18: #{dyt.1} parent=1 // pred_check
      _
    $region19: #{dyt.1} parent=1 // pred_check_branch
      %41 = sbr.rel (0) target = $region21
    $region20: #{dyt.1} parent=1 // pred_region
      // Predicated region
      $region22: #{dyt.1} parent=20 // pred_check
        _
      $region23: #{dyt.1} parent=20 // pred_check_branch
        %43 = sbr.rel (0) target = $region25
      $region24: #{dyt.1} parent=20 // pred_region
        // Predicated region
        $region26: #{dyt.1} parent=24 // pred_check
          _
        $region27: #{dyt.1} parent=24 // pred_check_branch
          %45 = sbr.rel target = $region29
        $region28: #{dyt.1} parent=24 // pred_region
          // Predicated region
          $region41: #{dyt.1} parent=28 // pred_check
            _
          $region42: #{dyt.1} parent=28 // pred_check_branch
            %60 = sbr.rel (0) target = $region44
          $region43: #{dyt.1} parent=28 // pred_region
            loop: start=0, step=1, limit=1
            $region45: #{dyt.1} parent=43 // loop_pre_header
              _
            $region46: #{dyt.1} parent=43 // loop_header
              %s63 = sphi 0, %s67
              %p64 = scmp.ge.s32.totalorder %s63, 1
              %s68 = sphi [#allocation3], [#allocation3]
              %s69 = sphi %s4, %s4
            $region47: #{dyt.1} parent=43 // loop_header_branch
              %66 = sbr.rel (%p64) target = $region51
            $region48: #{dyt.1} parent=43 // loop_body
              %v70 = vld [vmem:[%s68] sm:$0xf]
              %71 = vst [vmem:[%s69] sm:$0xf] %v70
            $region49: #{dyt.1} parent=43 // loop_footer
              %s67 = sadd.s32 1, %s63
            $region50: #{dyt.1} parent=43 // loop_footer_branch
              %62 = sbr.rel target = $region46
            $region51: #{dyt.1} parent=43 // loop_exit
              _
          $region44: #{dyt.1} parent=28 // pred_fallthru
            _
        $region29: #{dyt.1} parent=24 // pred_fallthru
          _
        // Predicated region
        $region30: #{dyt.1} parent=24 // pred_check
          _
        $region31: #{dyt.1} parent=24 // pred_check_branch
          %47 = sbr.rel (0) target = $region33
        $region32: #{dyt.1} parent=24 // pred_region
          loop: start=0, step=1, limit=1
          $region34: #{dyt.1} parent=32 // loop_pre_header
            _
          $region35: #{dyt.1} parent=32 // loop_header
            %s50 = sphi 0, %s54
            %p51 = scmp.ge.s32.totalorder %s50, 1
            %s55 = sphi [#allocation3], [#allocation3]
            %s56 = sphi %s4, %s4
          $region36: #{dyt.1} parent=32 // loop_header_branch
            %53 = sbr.rel (%p51) target = $region40
          $region37: #{dyt.1} parent=32 // loop_body
            %v57 = vld [vmem:[%s55] sm:$0xf]
            %58 = vst [vmem:[%s56] sm:$0xf] %v57
          $region38: #{dyt.1} parent=32 // loop_footer
            %s54 = sadd.s32 1, %s50
          $region39: #{dyt.1} parent=32 // loop_footer_branch
            %49 = sbr.rel target = $region35
          $region40: #{dyt.1} parent=32 // loop_exit
            _
        $region33: #{dyt.1} parent=24 // pred_fallthru
          _
      $region25: #{dyt.1} parent=20 // pred_fallthru
        _
      %72 = vnop
    $region21: #{dyt.1} parent=1 // pred_fallthru
      _
    // Predicated region
    $region52: #{dyt.1} parent=1 // pred_check
      _
    $region53: #{dyt.1} parent=1 // pred_check_branch
      %74 = sbr.rel (0) target = $region55
    $region54: #{dyt.1} parent=1 // pred_region
      _
    $region55: #{dyt.1} parent=1 // pred_fallthru
      _

</llo_original>
